<compile_context>
chip_gen: v6e
topology: v6e:2x2x1
jax: 0.10.0
libtpu: 0.0.40
codegen_flags: <defaults>
</compile_context>

<pallas_src>
import functools

import jax
import jax.numpy as jnp
from jax.experimental import pallas as pl
from jax.experimental.pallas import tpu as pltpu

_LANE = 128
_SUBLANE = 8


def _round_up(x: int, m: int) -> int:
    return ((x + m - 1) // m) * m


def _fused_mlp_kernel(x_ref, *refs, num_layers: int, apply_final_relu: bool,
                      compute_dtype):
    """Fused Linear(+ReLU) stack; intermediates never leave VMEM/vregs.

    refs = (w0, b0, ..., w_{L-1}, b_{L-1}, o_ref). Weights are [in_p, out_p],
    already transposed, lane-padded and stored in `compute_dtype` (no per-tile
    VPU re-cast). Biases are [1, out_p] f32; the bias-add / ReLU epilogue runs
    in f32 on the MXU's f32 accumulator (v5e has no bf16 VPU).
    """
    o_ref = refs[-1]
    h = x_ref[...]
    for i in range(num_layers):
        w = refs[2 * i][...]
        b = refs[2 * i + 1][...]
        y = jnp.dot(h.astype(compute_dtype), w,
                    preferred_element_type=jnp.float32)
        y = y + b
        if i < num_layers - 1 or apply_final_relu:
            y = jnp.maximum(y, 0.0)
        h = y
    o_ref[...] = h.astype(o_ref.dtype)


def init_mlp_params(key, inputs: int, hiddens: list[int], outputs: int):
    """PyTorch-style init: U(-1/sqrt(fan_in), 1/sqrt(fan_in)); weights [out, in]."""
    dims = [inputs, *hiddens, outputs]
    params = []
    for i in range(len(dims) - 1):
        fan_in, fan_out = dims[i], dims[i + 1]
        key, kw, kb = jax.random.split(key, 3)
        bound = 1.0 / jnp.sqrt(jnp.float32(fan_in))
        w = jax.random.uniform(kw, (fan_out, fan_in), jnp.float32, -bound, bound)
        b = jax.random.uniform(kb, (fan_out,), jnp.float32, -bound, bound)
        params.append((w, b))
    return params


def prepare_mlp_params(params, weight_dtype=jnp.float32):
    """One-time prep outside the hot path: transpose [out,in] -> [in,out],
    zero-pad feature dims to 128-lane multiples, and store weights in the
    compute dtype (bf16 recommended on v6e/v7x). Zero padding is exact:
    padded input columns hit zero weight rows; padded output columns get zero
    weights + zero bias, and ReLU(0)=0 keeps them zero through the stack."""
    prepared = []
    for w, b in params:
        out_f, in_f = w.shape
        in_p = _round_up(in_f, _LANE)
        out_p = _round_up(out_f, _LANE)
        w_t = jnp.zeros((in_p, out_p), weight_dtype).at[:in_f, :out_f].set(
            w.T.astype(weight_dtype))
        b_p = jnp.zeros((1, out_p), jnp.float32).at[0, :out_f].set(
            b.astype(jnp.float32))
        prepared.append((w_t, b_p))
    return prepared


def _vmem_budget_bytes() -> int:
    """~80% of physical per-core VMEM: leaves Mosaic scratch/spill headroom.
    128 MiB (v5e/v6e) -> ~102 MiB; 64 MiB per-TC (v7x) -> ~51 MiB."""
    try:
        phys = int(pltpu.get_tpu_info().vmem_capacity_bytes)
    except Exception:
        phys = 64 << 20  # assume the smallest (v7x per-TC) if query unavailable
    return int(phys * 0.8)


def _fused_group_call(xp, group, *, apply_final_relu, compute_dtype, tb,
                      vmem_limit):
    """One pallas_call fusing a contiguous run of layers."""
    B, in_p = xp.shape
    out_p = group[-1][0].shape[1]
    grid = (pl.cdiv(B, tb),)

    in_specs = [pl.BlockSpec((tb, in_p), lambda i: (i, 0))]
    args = [xp]
    for w, b in group:
        # Grid-invariant index_map -> DMA'd once, resident across all batch
        # tiles; Buffered(1) drops the useless second pipeline buffer.
        in_specs.append(pl.BlockSpec(w.shape, lambda i: (0, 0),
                                     pipeline_mode=pl.Buffered(1)))
        in_specs.append(pl.BlockSpec(b.shape, lambda i: (0, 0),
                                     pipeline_mode=pl.Buffered(1)))
        args += [w, b]
    out_specs = pl.BlockSpec((tb, out_p), lambda i: (i, 0))

    flops = 2 * B * sum(w.shape[0] * w.shape[1] for w, _ in group)
    bytes_accessed = (
        B * in_p * xp.dtype.itemsize
        + B * out_p * xp.dtype.itemsize
        + sum(w.size * w.dtype.itemsize + b.size * b.dtype.itemsize
              for w, b in group))
    cost = pl.CostEstimate(flops=flops, transcendentals=0,
                           bytes_accessed=bytes_accessed)

    kernel = functools.partial(
        _fused_mlp_kernel, num_layers=len(group),
        apply_final_relu=apply_final_relu, compute_dtype=compute_dtype)

    return pl.pallas_call(
        kernel,
        out_shape=jax.ShapeDtypeStruct((B, out_p), xp.dtype),
        grid=grid,
        in_specs=in_specs,
        out_specs=out_specs,
        compiler_params=pltpu.CompilerParams(
            dimension_semantics=("parallel",),   # shard batch tiles across TCs
            vmem_limit_bytes=vmem_limit),
        cost_estimate=cost,
    )(*args)


@functools.partial(
    jax.jit, static_argnames=("out_features", "compute_dtype", "block_batch"))
def mlp_forward_pallas(prepared_params, x, *, out_features: int,
                       compute_dtype=jnp.float32, block_batch: int = 512):
    """Fused forward pass. x: [B, Din] f32; prepared_params from prepare_mlp_params
    (weights must already be stored in `compute_dtype`)."""
    num_layers = len(prepared_params)
    B, Din = x.shape
    in_p0 = prepared_params[0][0].shape[0]
    cd = jnp.dtype(compute_dtype)
    assert all(w.dtype == cd for w, _ in prepared_params), (
        "prepare_mlp_params(weight_dtype=...) must match compute_dtype")

    # --- batch tiling: always 8-aligned; >= 2 tiles when batch allows (v7x) --
    b8 = _round_up(B, _SUBLANE)
    bb = _round_up(max(int(block_batch), _SUBLANE), _SUBLANE)
    tb = min(b8, bb)
    if b8 >= 2 * _SUBLANE:
        tb = min(tb, _round_up(pl.cdiv(b8, 2), _SUBLANE))

    # --- feature-pad the input only when strictly needed; never pad rows ----
    if Din != in_p0:
        xp = jnp.zeros((B, in_p0), x.dtype).at[:, :Din].set(x)
    else:
        xp = x

    budget = _vmem_budget_bytes()

    def group_need(group):
        gin = group[0][0].shape[0]
        gout = group[-1][0].shape[1]
        # single-buffered resident weights + biases
        wbytes = sum(w.size * w.dtype.itemsize + b.size * b.dtype.itemsize
                     for w, b in group)
        # double-buffered activation in/out tiles
        tiles = 2 * tb * gin * 4 + 2 * tb * gout * 4
        # two live f32 activations + compute-dtype cast copy (worst layer)
        act = max(tb * (w.shape[0] + w.shape[1]) * 4 + tb * w.shape[0] * cd.itemsize
                  for w, _ in group)
        return wbytes + tiles + act

    # Greedily fuse as many layers per call as fit the per-core VMEM budget;
    # oversized stacks (fit 128 MiB v6e but not 64 MiB v7x) split into several
    # fused calls with a single HBM round-trip of the activation in between.
    # TODO(synk): if a single layer's weights alone exceed the budget, tile the
    # output-feature (N) dim with an extra grid axis instead.
    groups, cur = [], []
    for layer in prepared_params:
        cand = cur + [layer]
        if cur and group_need(cand) > budget:
            groups.append(cur)
            cur = [layer]
        else:
            cur = cand
    groups.append(cur)

    h = xp
    done = 0
    for group in groups:
        done += len(group)
        h = _fused_group_call(
            h, group,
            apply_final_relu=(done < num_layers),
            compute_dtype=compute_dtype, tb=tb, vmem_limit=budget)
    return h[:, :out_features]


def mlp_forward_ref(params, x):
    n = len(params)
    h = x
    for i, (w, b) in enumerate(params):
        h = h @ w.T + b
        if i < n - 1:
            h = jnp.maximum(h, 0.0)
    return h


if __name__ == "__main__":
    key = jax.random.PRNGKey(0)
    key, kx = jax.random.split(key)

    # Small shapes consistent with MLP(inputs=16, hiddens=[32, 64], outputs=8)
    batch, inputs, hiddens, outputs = 8, 16, [32, 64], 8
    x = jax.random.normal(kx, (batch, inputs), jnp.float32)

    params = init_mlp_params(key, inputs, hiddens, outputs)
    ref = mlp_forward_ref(params, x)

    # 1) exact f32 path (tight reference check)
    prep_f32 = prepare_mlp_params(params, weight_dtype=jnp.float32)
    out_f32 = jax.block_until_ready(
        mlp_forward_pallas(prep_f32, x, out_features=outputs,
                           compute_dtype=jnp.float32))
    assert out_f32.shape == (batch, outputs), out_f32.shape
    assert jnp.allclose(out_f32, ref, atol=1e-5, rtol=1e-5), "f32 mismatch"

    # 2) recommended fast path: bf16 weights + bf16 MXU, f32 accumulate/epilogue
    prep_bf16 = prepare_mlp_params(params, weight_dtype=jnp.bfloat16)
    out_bf16 = jax.block_until_ready(
        mlp_forward_pallas(prep_bf16, x, out_features=outputs,
                           compute_dtype=jnp.bfloat16))
    rel_err = jnp.linalg.norm(out_bf16 - ref) / jnp.linalg.norm(ref)
    assert out_bf16.shape == (batch, outputs), out_bf16.shape
    assert float(rel_err) < 2e-2, f"bf16 rel err too large: {rel_err}"

    print("KERNEL_OK")
</pallas_src>

<mosaic_0001>
module attributes {stable_mosaic.version = 11 : i64} {
  func.func @_fused_mlp_kernel(%arg0: i32, %arg1: memref<8x128xf32, #tpu.memory_space<vmem>>, %arg2: memref<128x128xf32, #tpu.memory_space<vmem>>, %arg3: memref<1x128xf32, #tpu.memory_space<vmem>>, %arg4: memref<128x128xf32, #tpu.memory_space<vmem>>, %arg5: memref<1x128xf32, #tpu.memory_space<vmem>>, %arg6: memref<128x128xf32, #tpu.memory_space<vmem>>, %arg7: memref<1x128xf32, #tpu.memory_space<vmem>>, %arg8: memref<8x128xf32, #tpu.memory_space<vmem>>) attributes {dimension_semantics = [#tpu.dimension_semantics<parallel>], iteration_bounds = array<i64: 1>, scalar_prefetch = 0 : i64, scratch_operands = 0 : i64, tpu.core_type = #tpu.core_type<tc>, window_params = [{transform_indices = @transform_0, window_bounds = array<i64: 8, 128>}, {pipeline_mode = #tpu.pipeline_mode<synchronous>, transform_indices = @transform_1, window_bounds = array<i64: 128, 128>}, {pipeline_mode = #tpu.pipeline_mode<synchronous>, transform_indices = @transform_2, window_bounds = array<i64: 1, 128>}, {pipeline_mode = #tpu.pipeline_mode<synchronous>, transform_indices = @transform_3, window_bounds = array<i64: 128, 128>}, {pipeline_mode = #tpu.pipeline_mode<synchronous>, transform_indices = @transform_4, window_bounds = array<i64: 1, 128>}, {pipeline_mode = #tpu.pipeline_mode<synchronous>, transform_indices = @transform_5, window_bounds = array<i64: 128, 128>}, {pipeline_mode = #tpu.pipeline_mode<synchronous>, transform_indices = @transform_6, window_bounds = array<i64: 1, 128>}, {transform_indices = @transform_7, window_bounds = array<i64: 8, 128>}]} {
    %c0 = arith.constant 0 : index
    %c0_0 = arith.constant 0 : index
    %0 = vector.load %arg1[%c0, %c0_0] : memref<8x128xf32, #tpu.memory_space<vmem>>, vector<8x128xf32>
    %c0_1 = arith.constant 0 : index
    %c0_2 = arith.constant 0 : index
    %1 = vector.load %arg2[%c0_1, %c0_2] : memref<128x128xf32, #tpu.memory_space<vmem>>, vector<128x128xf32>
    %c0_3 = arith.constant 0 : index
    %c0_4 = arith.constant 0 : index
    %2 = vector.load %arg3[%c0_3, %c0_4] : memref<1x128xf32, #tpu.memory_space<vmem>>, vector<1x128xf32>
    %cst = arith.constant dense<0.000000e+00> : vector<8x128xf32>
    %3 = tpu.matmul %0, %1, %cst {dimension_numbers = #tpu.dot_dimension_numbers<[1], [0], [0], [1], [0, 0, 1, 1], [], []>} : vector<8x128xf32>, vector<128x128xf32>, vector<8x128xf32> -> vector<8x128xf32>
    %4 = vector.broadcast %2 : vector<1x128xf32> to vector<8x128xf32>
    %5 = arith.addf %3, %4 : vector<8x128xf32>
    %cst_5 = arith.constant 0.000000e+00 : f32
    %6 = vector.broadcast %cst_5 : f32 to vector<8x128xf32>
    %7 = arith.maximumf %5, %6 : vector<8x128xf32>
    %c0_6 = arith.constant 0 : index
    %c0_7 = arith.constant 0 : index
    %8 = vector.load %arg4[%c0_6, %c0_7] : memref<128x128xf32, #tpu.memory_space<vmem>>, vector<128x128xf32>
    %c0_8 = arith.constant 0 : index
    %c0_9 = arith.constant 0 : index
    %9 = vector.load %arg5[%c0_8, %c0_9] : memref<1x128xf32, #tpu.memory_space<vmem>>, vector<1x128xf32>
    %cst_10 = arith.constant dense<0.000000e+00> : vector<8x128xf32>
    %10 = tpu.matmul %7, %8, %cst_10 {dimension_numbers = #tpu.dot_dimension_numbers<[1], [0], [0], [1], [0, 0, 1, 1], [], []>} : vector<8x128xf32>, vector<128x128xf32>, vector<8x128xf32> -> vector<8x128xf32>
    %11 = vector.broadcast %9 : vector<1x128xf32> to vector<8x128xf32>
    %12 = arith.addf %10, %11 : vector<8x128xf32>
    %cst_11 = arith.constant 0.000000e+00 : f32
    %13 = vector.broadcast %cst_11 : f32 to vector<8x128xf32>
    %14 = arith.maximumf %12, %13 : vector<8x128xf32>
    %c0_12 = arith.constant 0 : index
    %c0_13 = arith.constant 0 : index
    %15 = vector.load %arg6[%c0_12, %c0_13] : memref<128x128xf32, #tpu.memory_space<vmem>>, vector<128x128xf32>
    %c0_14 = arith.constant 0 : index
    %c0_15 = arith.constant 0 : index
    %16 = vector.load %arg7[%c0_14, %c0_15] : memref<1x128xf32, #tpu.memory_space<vmem>>, vector<1x128xf32>
    %cst_16 = arith.constant dense<0.000000e+00> : vector<8x128xf32>
    %17 = tpu.matmul %14, %15, %cst_16 {dimension_numbers = #tpu.dot_dimension_numbers<[1], [0], [0], [1], [0, 0, 1, 1], [], []>} : vector<8x128xf32>, vector<128x128xf32>, vector<8x128xf32> -> vector<8x128xf32>
    %18 = vector.broadcast %16 : vector<1x128xf32> to vector<8x128xf32>
    %19 = arith.addf %17, %18 : vector<8x128xf32>
    %c0_17 = arith.constant 0 : index
    %c0_18 = arith.constant 0 : index
    %20 = vector.load %arg8[%c0_17, %c0_18] : memref<8x128xf32, #tpu.memory_space<vmem>>, vector<8x128xf32>
    tpu.vector_store %arg8[%c0_17, %c0_18], %19 {strides = array<i32>} : memref<8x128xf32, #tpu.memory_space<vmem>>, vector<8x128xf32>,
    return
  }
  func.func @transform_0(%arg0: i32) -> (i32, i32) {
    %c0_i32 = arith.constant 0 : i32
    %c0_i32_0 = arith.constant 0 : i32
    return %arg0, %c0_i32 : i32, i32
  }
  func.func @transform_1(%arg0: i32) -> (i32, i32) {
    %c0_i32 = arith.constant 0 : i32
    %c0_i32_0 = arith.constant 0 : i32
    %c0_i32_1 = arith.constant 0 : i32
    return %c0_i32, %c0_i32_0 : i32, i32
  }
  func.func @transform_2(%arg0: i32) -> (i32, i32) {
    %c0_i32 = arith.constant 0 : i32
    %c0_i32_0 = arith.constant 0 : i32
    %c0_i32_1 = arith.constant 0 : i32
    return %c0_i32, %c0_i32_0 : i32, i32
  }
  func.func @transform_3(%arg0: i32) -> (i32, i32) {
    %c0_i32 = arith.constant 0 : i32
    %c0_i32_0 = arith.constant 0 : i32
    %c0_i32_1 = arith.constant 0 : i32
    return %c0_i32, %c0_i32_0 : i32, i32
  }
  func.func @transform_4(%arg0: i32) -> (i32, i32) {
    %c0_i32 = arith.constant 0 : i32
    %c0_i32_0 = arith.constant 0 : i32
    %c0_i32_1 = arith.constant 0 : i32
    return %c0_i32, %c0_i32_0 : i32, i32
  }
  func.func @transform_5(%arg0: i32) -> (i32, i32) {
    %c0_i32 = arith.constant 0 : i32
    %c0_i32_0 = arith.constant 0 : i32
    %c0_i32_1 = arith.constant 0 : i32
    return %c0_i32, %c0_i32_0 : i32, i32
  }
  func.func @transform_6(%arg0: i32) -> (i32, i32) {
    %c0_i32 = arith.constant 0 : i32
    %c0_i32_0 = arith.constant 0 : i32
    %c0_i32_1 = arith.constant 0 : i32
    return %c0_i32, %c0_i32_0 : i32, i32
  }
  func.func @transform_7(%arg0: i32) -> (i32, i32) {
    %c0_i32 = arith.constant 0 : i32
    %c0_i32_0 = arith.constant 0 : i32
    return %arg0, %c0_i32 : i32, i32
  }
}

</mosaic_0001>

<llo_original>
// kernel: mlp_forward_pallas.1
$region0: #{mlp_forward_pallas.1}
  #allocation0 [shape = 'u32[]', space=smem, size = 0x4, offset = 0x4, fixed_abs, tag = 'smem constant byte address 0x4 - core index']
  #allocation1 [shape = 'u32[144,128]{1,0:T(1,128)}', space=vmem, size = 0x12000, scoped, tag = 'internal scratch']
  %s0 = inlined_call_operand.vmem [shape: f32[8,128], index: 0, kind: input, shape index: {}]
  %s1 = inlined_call_operand.hbm [shape: f32[128,128], index: 1, kind: input, shape index: {}]
  %s2 = inlined_call_operand.vmem [shape: f32[1,128], index: 2, kind: input, shape index: {}]
  %s3 = inlined_call_operand.hbm [shape: f32[128,128], index: 3, kind: input, shape index: {}]
  %s4 = inlined_call_operand.vmem [shape: f32[1,128], index: 4, kind: input, shape index: {}]
  %s5 = inlined_call_operand.hbm [shape: f32[128,128], index: 5, kind: input, shape index: {}]
  %s6 = inlined_call_operand.vmem [shape: f32[1,128], index: 6, kind: input, shape index: {}]
  %s7 = inlined_call_operand.hbm [shape: f32[8,128], index: 7, kind: output, shape index: {}]
  %s8 = sld [smem:[#allocation0]]
  $region50: #{mlp_forward_pallas.1} parent=0
    _
  %s10 = ssub.s32 1, %s8
  %s11 = scalar_select 0, %s10, %s8
  $region1: #{mlp_forward_pallas.1} parent=0
    #allocation2 [shape = 'u8[65536]{0}', space=vmem, size = 0x10000, scoped, tag = 'input window, operand 1, single buffered']
    #allocation3 [shape = 's32[1]{0}', space=sflag, size = 0x4, scoped, tag = 'scoped memory for mlp_forward_pallas.1']
    #allocation4 [shape = 's32[1]{0}', space=sflag, size = 0x4, scoped, tag = 'scoped memory for mlp_forward_pallas.1']
    #allocation5 [shape = 'u8[65536]{0}', space=vmem, size = 0x10000, scoped, tag = 'input window, operand 3, single buffered']
    #allocation6 [shape = 's32[1]{0}', space=sflag, size = 0x4, scoped, tag = 'scoped memory for mlp_forward_pallas.1']
    #allocation7 [shape = 'u8[65536]{0}', space=vmem, size = 0x10000, scoped, tag = 'input window, operand 5, single buffered']
    #allocation8 [shape = 'u8[4096]{0}', space=vmem, size = 0x1000, scoped, tag = 'output window, operand 0, single buffered']
    %12 = vsyncpa [#allocation3], 0
    %13 = vsyncpa [#allocation6], 0
    %14 = vsyncpa [#allocation4], 0
    // Predicated region
    $region2: #{mlp_forward_pallas.1} parent=1 // pred_check
      _
    $region3: #{mlp_forward_pallas.1} parent=1 // pred_check_branch
      %16 = sbr.rel (0) target = $region5
    $region4: #{mlp_forward_pallas.1} parent=1 // pred_region
      _
    $region5: #{mlp_forward_pallas.1} parent=1 // pred_fallthru
      _
    // Predicated region
    $region6: #{mlp_forward_pallas.1} parent=1 // pred_check
      _
    $region7: #{mlp_forward_pallas.1} parent=1 // pred_check_branch
      %18 = sbr.rel (0) target = $region9
    $region8: #{mlp_forward_pallas.1} parent=1 // pred_region
      %s20 = ssub.s32 2048, 2048
      %21 = vsyncadd [#allocation3], %s20
      %s22 = sshll.u32 [#allocation2], 4
      %s23 = int_to_ptr.vmem [resolvable:$true] %s22
      %28 = dma.hbm_to_vmem [thread:$0]  %s1, 2048, %s23, [#allocation3], 128, 128, 8
    $region9: #{mlp_forward_pallas.1} parent=1 // pred_fallthru
      _
    // Predicated region
    $region10: #{mlp_forward_pallas.1} parent=1 // pred_check
      _
    $region11: #{mlp_forward_pallas.1} parent=1 // pred_check_branch
      %30 = sbr.rel (0) target = $region13
    $region12: #{mlp_forward_pallas.1} parent=1 // pred_region
      _
    $region13: #{mlp_forward_pallas.1} parent=1 // pred_fallthru
      _
    // Predicated region
    $region14: #{mlp_forward_pallas.1} parent=1 // pred_check
      _
    $region15: #{mlp_forward_pallas.1} parent=1 // pred_check_branch
      %32 = sbr.rel (0) target = $region17
    $region16: #{mlp_forward_pallas.1} parent=1 // pred_region
      %s34 = ssub.s32 2048, 2048
      %35 = vsyncadd [#allocation6], %s34
      %s36 = sshll.u32 [#allocation5], 4
      %s37 = int_to_ptr.vmem [resolvable:$true] %s36
      %42 = dma.hbm_to_vmem [thread:$0]  %s3, 2048, %s37, [#allocation6], 128, 128, 8
    $region17: #{mlp_forward_pallas.1} parent=1 // pred_fallthru
      _
    // Predicated region
    $region18: #{mlp_forward_pallas.1} parent=1 // pred_check
      _
    $region19: #{mlp_forward_pallas.1} parent=1 // pred_check_branch
      %44 = sbr.rel (0) target = $region21
    $region20: #{mlp_forward_pallas.1} parent=1 // pred_region
      _
    $region21: #{mlp_forward_pallas.1} parent=1 // pred_fallthru
      _
    // Predicated region
    $region22: #{mlp_forward_pallas.1} parent=1 // pred_check
      _
    $region23: #{mlp_forward_pallas.1} parent=1 // pred_check_branch
      %46 = sbr.rel (0) target = $region25
    $region24: #{mlp_forward_pallas.1} parent=1 // pred_region
      %s48 = ssub.s32 2048, 2048
      %49 = vsyncadd [#allocation6], %s48
      %s50 = sshll.u32 [#allocation7], 4
      %s51 = int_to_ptr.vmem [resolvable:$true] %s50
      %56 = dma.hbm_to_vmem [thread:$0]  %s5, 2048, %s51, [#allocation6], 128, 128, 8
    $region25: #{mlp_forward_pallas.1} parent=1 // pred_fallthru
      _
    // Predicated region
    $region26: #{mlp_forward_pallas.1} parent=1 // pred_check
      _
    $region27: #{mlp_forward_pallas.1} parent=1 // pred_check_branch
      %58 = sbr.rel (0) target = $region29
    $region28: #{mlp_forward_pallas.1} parent=1 // pred_region
      _
    $region29: #{mlp_forward_pallas.1} parent=1 // pred_fallthru
      _
    // Predicated region
    $region30: #{mlp_forward_pallas.1} parent=1 // pred_check
      _
    $region31: #{mlp_forward_pallas.1} parent=1 // pred_check_branch
      %60 = sbr.rel (0) target = $region33
    $region32: #{mlp_forward_pallas.1} parent=1 // pred_region
      %61 = dma.done [#allocation3], 2048
    $region33: #{mlp_forward_pallas.1} parent=1 // pred_fallthru
      _
    // Predicated region
    $region34: #{mlp_forward_pallas.1} parent=1 // pred_check
      _
    $region35: #{mlp_forward_pallas.1} parent=1 // pred_check_branch
      %63 = sbr.rel (0) target = $region37
    $region36: #{mlp_forward_pallas.1} parent=1 // pred_region
      %64 = dma.done [#allocation6], 2048
    $region37: #{mlp_forward_pallas.1} parent=1 // pred_fallthru
      _
    // Predicated region
    $region38: #{mlp_forward_pallas.1} parent=1 // pred_check
      _
    $region39: #{mlp_forward_pallas.1} parent=1 // pred_check_branch
      %66 = sbr.rel (0) target = $region41
    $region40: #{mlp_forward_pallas.1} parent=1 // pred_region
      %67 = dma.done [#allocation6], 2048
    $region41: #{mlp_forward_pallas.1} parent=1 // pred_fallthru
      _
    %v68 = vld [vmem:[%s0] sm:$0xff]
    %v69 = vld [vmem:[#allocation2] sm:$0xff]
    %v70 = vld [vmem:[#allocation2 + $0x8] sm:$0xff]
    %v71 = vld [vmem:[#allocation2 + $0x10] sm:$0xff]
    %v72 = vld [vmem:[#allocation2 + $0x18] sm:$0xff]
    %v73 = vld [vmem:[#allocation2 + $0x20] sm:$0xff]
    %v74 = vld [vmem:[#allocation2 + $0x28] sm:$0xff]
    %v75 = vld [vmem:[#allocation2 + $0x30] sm:$0xff]
    %v76 = vld [vmem:[#allocation2 + $0x38] sm:$0xff]
    %v77 = vld [vmem:[#allocation2 + $0x40] sm:$0xff]
    %v78 = vld [vmem:[#allocation2 + $0x48] sm:$0xff]
    %v79 = vld [vmem:[#allocation2 + $0x50] sm:$0xff]
    %v80 = vld [vmem:[#allocation2 + $0x58] sm:$0xff]
    %v81 = vld [vmem:[#allocation2 + $0x60] sm:$0xff]
    %v82 = vld [vmem:[#allocation2 + $0x68] sm:$0xff]
    %v83 = vld [vmem:[#allocation2 + $0x70] sm:$0xff]
    %v84 = vld [vmem:[#allocation2 + $0x78] sm:$0xff]
    %v85 = vld [vmem:[%s2] sm:$0x1]
    %v87 = vlaneseq
    %v88 = vshrl.u32 %v87, 7
    %v89 = vsub.s32 0, %v88
    %v90 = vrot.slane %v85, %v89
    %92 = vmatprep.subr.mxu0 0.0
    %93 = vmatpush1.msra.mxu0 %v84
    %94 = vmatprep.subr.mxu0 0.0
    %95 = vmatpush1.msra.mxu0 %v83
    %96 = vmatprep.subr.mxu0 0.0
    %97 = vmatpush1.msra.mxu0 %v82
    %98 = vmatprep.subr.mxu0 0.0
    %99 = vmatpush1.msra.mxu0 %v81
    %100 = vmatprep.subr.mxu0 0.0
    %101 = vmatpush1.msra.mxu0 %v80
    %102 = vmatprep.subr.mxu0 0.0
    %103 = vmatpush1.msra.mxu0 %v79
    %104 = vmatprep.subr.mxu0 0.0
    %105 = vmatpush1.msra.mxu0 %v78
    %106 = vmatprep.subr.mxu0 0.0
    %107 = vmatpush1.msra.mxu0 %v77
    %108 = vmatprep.subr.mxu0 0.0
    %109 = vmatpush1.msra.mxu0 %v76
    %110 = vmatprep.subr.mxu0 0.0
    %111 = vmatpush1.msra.mxu0 %v75
    %112 = vmatprep.subr.mxu0 0.0
    %113 = vmatpush1.msra.mxu0 %v74
    %114 = vmatprep.subr.mxu0 0.0
    %115 = vmatpush1.msra.mxu0 %v73
    %116 = vmatprep.subr.mxu0 0.0
    %117 = vmatpush1.msra.mxu0 %v72
    %118 = vmatprep.subr.mxu0 0.0
    %119 = vmatpush1.msra.mxu0 %v71
    %120 = vmatprep.subr.mxu0 0.0
    %121 = vmatpush1.msra.mxu0 %v70
    %122 = vmatprep.subr.mxu0 0.0
    %123 = vmatpush1.msra.mxu0 %v69
    %124 = vmatprep.subr.mxu0 0.0
    %125 = vmatpush2.msra.mxu0 0.0
    %126 = vmatprep.subr.mxu0 0.0
    %127 = vmatpush2.msra.mxu0 0.0
    %128 = vmatprep.subr.mxu0 0.0
    %129 = vmatpush2.msra.mxu0 0.0
    %130 = vmatprep.subr.mxu0 0.0
    %131 = vmatpush2.msra.mxu0 0.0
    %132 = vmatprep.subr.mxu0 0.0
    %133 = vmatpush2.msra.mxu0 0.0
    %134 = vmatprep.subr.mxu0 0.0
    %135 = vmatpush2.msra.mxu0 0.0
    %136 = vmatprep.subr.mxu0 0.0
    %137 = vmatpush2.msra.mxu0 0.0
    %138 = vmatprep.subr.mxu0 0.0
    %139 = vmatpush2.msra.mxu0 0.0
    %140 = vmatprep.subr.mxu0 0.0
    %141 = vmatpush2.msra.mxu0 0.0
    %142 = vmatprep.subr.mxu0 0.0
    %143 = vmatpush2.msra.mxu0 0.0
    %144 = vmatprep.subr.mxu0 0.0
    %145 = vmatpush2.msra.mxu0 0.0
    %146 = vmatprep.subr.mxu0 0.0
    %147 = vmatpush2.msra.mxu0 0.0
    %148 = vmatprep.subr.mxu0 0.0
    %149 = vmatpush2.msra.mxu0 0.0
    %150 = vmatprep.subr.mxu0 0.0
    %151 = vmatpush2.msra.mxu0 0.0
    %152 = vmatprep.subr.mxu0 0.0
    %153 = vmatpush2.msra.mxu0 0.0
    %154 = vmatprep.subr.mxu0 0.0
    %155 = vmatpush2.msra.mxu0 0.0
    %156 = vmatprep.mubr.f32.mxu0 0.0
    %157 = vmatmul.mubr.f32.gmra.mxu0 %v68
    %v158 = vpop.f32.mrf.mxu0
    %v159 = vadd.f32 %v90, %v158
    %v160 = vpop.f32.mrf.mxu0
    %161 = vdwg.mxu0
    %v162 = vmax.f32 %v159, 0.0
    %v163 = vld [vmem:[#allocation5] sm:$0xff]
    %v164 = vld [vmem:[#allocation5 + $0x8] sm:$0xff]
    %v165 = vld [vmem:[#allocation5 + $0x10] sm:$0xff]
    %v166 = vld [vmem:[#allocation5 + $0x18] sm:$0xff]
    %v167 = vld [vmem:[#allocation5 + $0x20] sm:$0xff]
    %v168 = vld [vmem:[#allocation5 + $0x28] sm:$0xff]
    %v169 = vld [vmem:[#allocation5 + $0x30] sm:$0xff]
    %v170 = vld [vmem:[#allocation5 + $0x38] sm:$0xff]
    %v171 = vld [vmem:[#allocation5 + $0x40] sm:$0xff]
    %v172 = vld [vmem:[#allocation5 + $0x48] sm:$0xff]
    %v173 = vld [vmem:[#allocation5 + $0x50] sm:$0xff]
    %v174 = vld [vmem:[#allocation5 + $0x58] sm:$0xff]
    %v175 = vld [vmem:[#allocation5 + $0x60] sm:$0xff]
    %v176 = vld [vmem:[#allocation5 + $0x68] sm:$0xff]
    %v177 = vld [vmem:[#allocation5 + $0x70] sm:$0xff]
    %v178 = vld [vmem:[#allocation5 + $0x78] sm:$0xff]
    %v179 = vld [vmem:[%s4] sm:$0x1]
    %v181 = vlaneseq
    %v182 = vshrl.u32 %v181, 7
    %v183 = vsub.s32 0, %v182
    %v184 = vrot.slane %v179, %v183
    %186 = vmatprep.subr.mxu0 0.0
    %187 = vmatpush1.msra.mxu0 %v178
    %188 = vmatprep.subr.mxu0 0.0
    %189 = vmatpush1.msra.mxu0 %v177
    %190 = vmatprep.subr.mxu0 0.0
    %191 = vmatpush1.msra.mxu0 %v176
    %192 = vmatprep.subr.mxu0 0.0
    %193 = vmatpush1.msra.mxu0 %v175
    %194 = vmatprep.subr.mxu0 0.0
    %195 = vmatpush1.msra.mxu0 %v174
    %196 = vmatprep.subr.mxu0 0.0
    %197 = vmatpush1.msra.mxu0 %v173
    %198 = vmatprep.subr.mxu0 0.0
    %199 = vmatpush1.msra.mxu0 %v172
    %200 = vmatprep.subr.mxu0 0.0
    %201 = vmatpush1.msra.mxu0 %v171
    %202 = vmatprep.subr.mxu0 0.0
    %203 = vmatpush1.msra.mxu0 %v170
    %204 = vmatprep.subr.mxu0 0.0
    %205 = vmatpush1.msra.mxu0 %v169
    %206 = vmatprep.subr.mxu0 0.0
    %207 = vmatpush1.msra.mxu0 %v168
    %208 = vmatprep.subr.mxu0 0.0
    %209 = vmatpush1.msra.mxu0 %v167
    %210 = vmatprep.subr.mxu0 0.0
    %211 = vmatpush1.msra.mxu0 %v166
    %212 = vmatprep.subr.mxu0 0.0
    %213 = vmatpush1.msra.mxu0 %v165
    %214 = vmatprep.subr.mxu0 0.0
    %215 = vmatpush1.msra.mxu0 %v164
    %216 = vmatprep.subr.mxu0 0.0
    %217 = vmatpush1.msra.mxu0 %v163
    %218 = vmatprep.subr.mxu0 0.0
    %219 = vmatpush2.msra.mxu0 0.0
    %220 = vmatprep.subr.mxu0 0.0
    %221 = vmatpush2.msra.mxu0 0.0
    %222 = vmatprep.subr.mxu0 0.0
    %223 = vmatpush2.msra.mxu0 0.0
    %224 = vmatprep.subr.mxu0 0.0
    %225 = vmatpush2.msra.mxu0 0.0
    %226 = vmatprep.subr.mxu0 0.0
    %227 = vmatpush2.msra.mxu0 0.0
    %228 = vmatprep.subr.mxu0 0.0
    %229 = vmatpush2.msra.mxu0 0.0
    %230 = vmatprep.subr.mxu0 0.0
    %231 = vmatpush2.msra.mxu0 0.0
    %232 = vmatprep.subr.mxu0 0.0
    %233 = vmatpush2.msra.mxu0 0.0
    %234 = vmatprep.subr.mxu0 0.0
    %235 = vmatpush2.msra.mxu0 0.0
    %236 = vmatprep.subr.mxu0 0.0
    %237 = vmatpush2.msra.mxu0 0.0
    %238 = vmatprep.subr.mxu0 0.0
    %239 = vmatpush2.msra.mxu0 0.0
    %240 = vmatprep.subr.mxu0 0.0
    %241 = vmatpush2.msra.mxu0 0.0
    %242 = vmatprep.subr.mxu0 0.0
    %243 = vmatpush2.msra.mxu0 0.0
    %244 = vmatprep.subr.mxu0 0.0
    %245 = vmatpush2.msra.mxu0 0.0
    %246 = vmatprep.subr.mxu0 0.0
    %247 = vmatpush2.msra.mxu0 0.0
    %248 = vmatprep.subr.mxu0 0.0
    %249 = vmatpush2.msra.mxu0 0.0
    %250 = vmatprep.mubr.f32.mxu0 0.0
    %251 = vmatmul.mubr.f32.gmra.mxu0 %v162
    %v252 = vpop.f32.mrf.mxu0
    %v253 = vadd.f32 %v184, %v252
    %v254 = vpop.f32.mrf.mxu0
    %255 = vdwg.mxu0
    %v256 = vmax.f32 %v253, 0.0
    %v257 = vld [vmem:[#allocation7] sm:$0xff]
    %v258 = vld [vmem:[#allocation7 + $0x8] sm:$0xff]
    %v259 = vld [vmem:[#allocation7 + $0x10] sm:$0xff]
    %v260 = vld [vmem:[#allocation7 + $0x18] sm:$0xff]
    %v261 = vld [vmem:[#allocation7 + $0x20] sm:$0xff]
    %v262 = vld [vmem:[#allocation7 + $0x28] sm:$0xff]
    %v263 = vld [vmem:[#allocation7 + $0x30] sm:$0xff]
    %v264 = vld [vmem:[#allocation7 + $0x38] sm:$0xff]
    %v265 = vld [vmem:[#allocation7 + $0x40] sm:$0xff]
    %v266 = vld [vmem:[#allocation7 + $0x48] sm:$0xff]
    %v267 = vld [vmem:[#allocation7 + $0x50] sm:$0xff]
    %v268 = vld [vmem:[#allocation7 + $0x58] sm:$0xff]
    %v269 = vld [vmem:[#allocation7 + $0x60] sm:$0xff]
    %v270 = vld [vmem:[#allocation7 + $0x68] sm:$0xff]
    %v271 = vld [vmem:[#allocation7 + $0x70] sm:$0xff]
    %v272 = vld [vmem:[#allocation7 + $0x78] sm:$0xff]
    %v273 = vld [vmem:[%s6] sm:$0x1]
    %v275 = vlaneseq
    %v276 = vshrl.u32 %v275, 7
    %v277 = vsub.s32 0, %v276
    %v278 = vrot.slane %v273, %v277
    %280 = vmatprep.subr.mxu0 0.0
    %281 = vmatpush1.msra.mxu0 %v272
    %282 = vmatprep.subr.mxu0 0.0
    %283 = vmatpush1.msra.mxu0 %v271
    %284 = vmatprep.subr.mxu0 0.0
    %285 = vmatpush1.msra.mxu0 %v270
    %286 = vmatprep.subr.mxu0 0.0
    %287 = vmatpush1.msra.mxu0 %v269
    %288 = vmatprep.subr.mxu0 0.0
    %289 = vmatpush1.msra.mxu0 %v268
    %290 = vmatprep.subr.mxu0 0.0
    %291 = vmatpush1.msra.mxu0 %v267
    %292 = vmatprep.subr.mxu0 0.0
    %293 = vmatpush1.msra.mxu0 %v266
    %294 = vmatprep.subr.mxu0 0.0
    %295 = vmatpush1.msra.mxu0 %v265
    %296 = vmatprep.subr.mxu0 0.0
    %297 = vmatpush1.msra.mxu0 %v264
    %298 = vmatprep.subr.mxu0 0.0
    %299 = vmatpush1.msra.mxu0 %v263
    %300 = vmatprep.subr.mxu0 0.0
    %301 = vmatpush1.msra.mxu0 %v262
    %302 = vmatprep.subr.mxu0 0.0
    %303 = vmatpush1.msra.mxu0 %v261
    %304 = vmatprep.subr.mxu0 0.0
    %305 = vmatpush1.msra.mxu0 %v260
    %306 = vmatprep.subr.mxu0 0.0
    %307 = vmatpush1.msra.mxu0 %v259
    %308 = vmatprep.subr.mxu0 0.0
    %309 = vmatpush1.msra.mxu0 %v258
    %310 = vmatprep.subr.mxu0 0.0
    %311 = vmatpush1.msra.mxu0 %v257
    %312 = vmatprep.subr.mxu0 0.0
    %313 = vmatpush2.msra.mxu0 0.0
    %314 = vmatprep.subr.mxu0 0.0
    %315 = vmatpush2.msra.mxu0 0.0
    %316 = vmatprep.subr.mxu0 0.0
    %317 = vmatpush2.msra.mxu0 0.0
    %318 = vmatprep.subr.mxu0 0.0
    %319 = vmatpush2.msra.mxu0 0.0
    %320 = vmatprep.subr.mxu0 0.0
    %321 = vmatpush2.msra.mxu0 0.0
    %322 = vmatprep.subr.mxu0 0.0
    %323 = vmatpush2.msra.mxu0 0.0
    %324 = vmatprep.subr.mxu0 0.0
    %325 = vmatpush2.msra.mxu0 0.0
    %326 = vmatprep.subr.mxu0 0.0
    %327 = vmatpush2.msra.mxu0 0.0
    %328 = vmatprep.subr.mxu0 0.0
    %329 = vmatpush2.msra.mxu0 0.0
    %330 = vmatprep.subr.mxu0 0.0
    %331 = vmatpush2.msra.mxu0 0.0
    %332 = vmatprep.subr.mxu0 0.0
    %333 = vmatpush2.msra.mxu0 0.0
    %334 = vmatprep.subr.mxu0 0.0
    %335 = vmatpush2.msra.mxu0 0.0
    %336 = vmatprep.subr.mxu0 0.0
    %337 = vmatpush2.msra.mxu0 0.0
    %338 = vmatprep.subr.mxu0 0.0
    %339 = vmatpush2.msra.mxu0 0.0
    %340 = vmatprep.subr.mxu0 0.0
    %341 = vmatpush2.msra.mxu0 0.0
    %342 = vmatprep.subr.mxu0 0.0
    %343 = vmatpush2.msra.mxu0 0.0
    %344 = vmatprep.mubr.f32.mxu0 0.0
    %345 = vmatmul.mubr.f32.gmra.mxu0 %v256
    %v346 = vpop.f32.mrf.mxu0
    %v347 = vadd.f32 %v278, %v346
    %v348 = vpop.f32.mrf.mxu0
    %349 = vdwg.mxu0
    %350 = vst [vmem:[#allocation8] sm:$0xff] %v347
    // Predicated region
    $region42: #{mlp_forward_pallas.1} parent=1 // pred_check
      _
    $region43: #{mlp_forward_pallas.1} parent=1 // pred_check_branch
      %352 = sbr.rel (0) target = $region45
    $region44: #{mlp_forward_pallas.1} parent=1 // pred_region
      %s354 = ssub.s32 128, 128
      %355 = vsyncadd [#allocation4], %s354
      %s357 = sshll.u32 [#allocation8], 4
      %s358 = int_to_ptr.vmem [resolvable:$true] %s357
      %360 = dma.vmem_to_hbm [thread:$0]  %s358, 128, %s7, [#allocation4]
    $region45: #{mlp_forward_pallas.1} parent=1 // pred_fallthru
      _
    // Predicated region
    $region46: #{mlp_forward_pallas.1} parent=1 // pred_check
      _
    $region47: #{mlp_forward_pallas.1} parent=1 // pred_check_branch
      %362 = sbr.rel (0) target = $region49
    $region48: #{mlp_forward_pallas.1} parent=1 // pred_region
      %363 = dma.done [#allocation4], 128
    $region49: #{mlp_forward_pallas.1} parent=1 // pred_fallthru
      _
    %364 = vsyncpa [#allocation3], 1
    %365 = vsyncpa [#allocation6], 1
    %366 = vsyncpa [#allocation4], 1

</llo_original>
